<compile_context>
chip_gen: v5e
topology: v5e:2x2
jax: 0.10.0
libtpu: 0.0.40
codegen_flags: <defaults>
</compile_context>

<pallas_src>
import jax
import jax.numpy as jnp
from jax.experimental import pallas as pl
from jax.experimental.pallas import tpu as pltpu


def _round_up(x, m):
    return (x + m - 1) // m * m


def _pick_vmem_limit():
    """Generation-aware scoped-VMEM limit (v5e/v6e: 128 MiB phys, v7x: 64 MiB/TC)."""
    try:
        cap = int(pltpu.get_tpu_info().vmem_capacity_bytes)
    except Exception:
        return 32 * 1024 * 1024          # conservative fallback
    if cap >= 100 * 1024 * 1024:         # v5e / v6e
        return 96 * 1024 * 1024
    return min(44 * 1024 * 1024, int(cap * 0.7))   # v7x (64 MiB per TC)


_VMEM_LIMIT = _pick_vmem_limit()


# ----------------------------------------------------------------------------
# Tile selection helpers
# ----------------------------------------------------------------------------
def _pick_m_tile(Mp):
    for t in (512, 256, 128, 64, 32, 16):
        if Mp % t == 0:
            return t
    return 16


def _pick_row_tile(L):
    """Row tile for the implicit-GEMM conv (rows padded to <=12.5% overhead)."""
    bound = _round_up(L, 16)
    for t in (512, 256, 128, 64, 32, 16):
        if t <= bound and (_round_up(L, t) - L) * 8 <= L:
            return t
    return 16


# ----------------------------------------------------------------------------
# Pallas kernels
# ----------------------------------------------------------------------------
def _make_matmul_kernel(apply_relu):
    """Tiled matmul, f32 VMEM accumulator. out = maybe_relu(x @ w + bias)."""

    def kernel(x_ref, w_ref, b_ref, o_ref, acc_ref):
        @pl.when(pl.program_id(2) == 0)
        def _init():
            acc_ref[...] = jnp.zeros_like(acc_ref)

        acc_ref[...] += jnp.dot(x_ref[...], w_ref[...],
                                preferred_element_type=jnp.float32)

        @pl.when(pl.program_id(2) == pl.num_programs(2) - 1)
        def _finalize():
            out = acc_ref[...] + b_ref[...]
            if apply_relu:
                out = jnp.maximum(out, 0.0)
            o_ref[...] = out.astype(o_ref.dtype)

    return kernel


def _make_implicit_conv_kernel(cin, tm, halo, offsets, apply_relu, has_residual):
    """Implicit-GEMM stride-1 conv step.

    The padded activation lives in HBM as a flat (rows, Cin) array.  Each grid
    step DMAs rows [i*tm, i*tm + tm + halo) into VMEM once and accumulates the
    kh*kw shifted-window matmuls (weight slice per window) into an f32 value,
    then applies bias (+residual)(+ReLU) and stores the (tm, tn) output block.
    """
    n_win = len(offsets)

    def _body(x_hbm, w_ref, b_ref, r_ref, o_ref, xbuf, sem):
        i = pl.program_id(0)
        row0 = pl.multiple_of(i * tm, tm)
        cp = pltpu.make_async_copy(x_hbm.at[pl.ds(row0, tm + halo), :],
                                   xbuf, sem.at[0])
        cp.start()
        cp.wait()

        acc = jnp.dot(xbuf[offsets[0]:offsets[0] + tm, :],
                      w_ref[0:cin, :], preferred_element_type=jnp.float32)
        for k in range(1, n_win):
            off = offsets[k]
            acc = acc + jnp.dot(xbuf[off:off + tm, :],
                                w_ref[k * cin:(k + 1) * cin, :],
                                preferred_element_type=jnp.float32)

        out = acc + b_ref[...]
        if has_residual:
            out = out + r_ref[...].astype(jnp.float32)
        if apply_relu:
            out = jnp.maximum(out, 0.0)
        o_ref[...] = out.astype(o_ref.dtype)

    if has_residual:
        def kernel(x_hbm, w_ref, b_ref, r_ref, o_ref, xbuf, sem):
            _body(x_hbm, w_ref, b_ref, r_ref, o_ref, xbuf, sem)
    else:
        def kernel(x_hbm, w_ref, b_ref, o_ref, xbuf, sem):
            _body(x_hbm, w_ref, b_ref, None, o_ref, xbuf, sem)
    return kernel


def _maxpool_kernel(p_ref, o_ref):
    # grid = (M tiles, 9 windows); output tile resident across the window axis.
    @pl.when(pl.program_id(1) == 0)
    def _init():
        o_ref[...] = jnp.full(o_ref.shape, -jnp.inf, o_ref.dtype)

    o_ref[...] = jnp.maximum(o_ref[...], p_ref[0])


def _avgpool_kernel(x_ref, o_ref):
    o_ref[...] = jnp.mean(x_ref[...].astype(jnp.float32), axis=1)


# ----------------------------------------------------------------------------
# Pallas-backed ops
# ----------------------------------------------------------------------------
def matmul_affine(x, w, bias, relu=False, out_dtype=jnp.bfloat16,
                  compute_dtype=jnp.bfloat16):
    """x:(M,K), w:(K,N), bias:(N,).  out = maybe_relu(x @ w + bias)."""
    M, K = x.shape
    Kw, N = w.shape
    assert Kw == K

    itemsz = jnp.dtype(compute_dtype).itemsize
    Mp = _round_up(M, 16)
    Kp = _round_up(K, 128)
    tm = _pick_m_tile(Mp)
    tn = N                               # full N -> weights streamed once

    budget = max(int(_VMEM_LIMIT * 0.5), 8 * 1024 * 1024)

    def fits(tm_, tk_, tn_):
        return (2 * (tm_ * tk_ + tk_ * tn_ + tm_ * tn_) * itemsz
                + tm_ * tn_ * 4) <= budget

    while tm > 16 and not fits(tm, Kp, tn):
        tm //= 2
    if fits(tm, Kp, tn):
        tk = Kp                          # full K -> single K step, no revisits
    else:
        tk = 128
        for t in (2048, 1024, 512, 256):
            if Kp % t == 0 and fits(tm, t, tn):
                tk = t
                break

    # Guarantee >=2 parallel blocks when cheap (v7x dual-TensorCore sharding).
    if (Mp // tm) * (N // tn) < 2:
        if tm >= 32:
            tm //= 2
        elif N % 256 == 0:
            tn = N // 2

    grid = (Mp // tm, N // tn, Kp // tk)

    xp = x.astype(compute_dtype)
    if Mp != M or Kp != K:
        xp = jnp.pad(xp, ((0, Mp - M), (0, Kp - K)))
    wp = w.astype(compute_dtype)
    if Kp != K:
        wp = jnp.pad(wp, ((0, Kp - K), (0, 0)))
    bp = bias.reshape(1, N).astype(jnp.float32)

    bytes_accessed = (Mp * Kp * itemsz * (N // tn)
                      + Kp * N * itemsz
                      + Mp * N * jnp.dtype(out_dtype).itemsize + N * 4)
    cost = pl.CostEstimate(flops=2 * Mp * N * Kp, transcendentals=0,
                           bytes_accessed=int(bytes_accessed))

    out = pl.pallas_call(
        _make_matmul_kernel(relu),
        out_shape=jax.ShapeDtypeStruct((Mp, N), out_dtype),
        grid_spec=pltpu.PrefetchScalarGridSpec(
            num_scalar_prefetch=0,
            grid=grid,
            in_specs=[
                pl.BlockSpec((tm, tk), lambda i, j, k: (i, k)),
                pl.BlockSpec((tk, tn), lambda i, j, k: (k, j)),
                pl.BlockSpec((1, tn), lambda i, j, k: (0, j)),
            ],
            out_specs=pl.BlockSpec((tm, tn), lambda i, j, k: (i, j)),
            scratch_shapes=[pltpu.VMEM((tm, tn), jnp.float32)],
        ),
        compiler_params=pltpu.CompilerParams(
            dimension_semantics=("parallel", "parallel", "arbitrary"),
            vmem_limit_bytes=_VMEM_LIMIT,
        ),
        cost_estimate=cost,
    )(xp, wp, bp)
    return out[:M] if Mp != M else out


def conv_implicit(x, w_packed, bias, kh, relu, residual=None):
    """Implicit-GEMM stride-1 'same' conv (kh x kh), fused bias(+res)(+ReLU).

    x: (N,H,W,C) bf16;  w_packed: (kh*kh*C, Cout) bf16 (BN scale folded in).
    """
    N, H, W, C = x.shape
    Cout = w_packed.shape[1]
    p = kh // 2
    Hp, Wp = H + 2 * p, W + 2 * p
    L = N * Hp * Wp                       # extended (garbage-row) output length
    halo = (kh - 1) * Wp + (kh - 1)

    tm = _pick_row_tile(L)
    Lp = _round_up(L, tm)
    if Lp // tm == 1 and tm >= 32:        # keep >=2 parallel blocks (v7x)
        tm //= 2
    tn = Cout
    if (Lp // tm) == 1 and Cout % 256 == 0:
        tn = Cout // 2

    # Pad spatially once and flatten; append zero tail rows for the DMA halo.
    xp = jnp.pad(x, ((0, 0), (p, p), (p, p), (0, 0))).reshape(L, C)
    x2 = jnp.pad(xp, ((0, Lp + halo - L), (0, 0)))

    inputs = [x2, w_packed, bias.reshape(1, Cout).astype(jnp.float32)]
    in_specs = [
        pl.BlockSpec(memory_space=pl.ANY),                        # activation in HBM
        pl.BlockSpec((kh * kh * C, tn), lambda i, j: (0, j)),     # full-K weights
        pl.BlockSpec((1, tn), lambda i, j: (0, j)),
    ]
    if residual is not None:
        r = jnp.pad(residual, ((0, 0), (0, 2 * p), (0, 2 * p), (0, 0)))
        r = r.reshape(L, Cout)
        r = jnp.pad(r, ((0, Lp - L), (0, 0))).astype(jnp.bfloat16)
        inputs.append(r)
        in_specs.append(pl.BlockSpec((tm, tn), lambda i, j: (i, j)))

    offsets = tuple(di * Wp + dj for di in range(kh) for dj in range(kh))
    kernel = _make_implicit_conv_kernel(C, tm, halo, offsets, relu,
                                        residual is not None)

    bytes_accessed = (x2.size * 2 * (Cout // tn) + w_packed.size * 2
                      + Lp * Cout * 2
                      + (Lp * Cout * 2 if residual is not None else 0))
    cost = pl.CostEstimate(flops=2 * Lp * Cout * kh * kh * C, transcendentals=0,
                           bytes_accessed=int(bytes_accessed))

    out = pl.pallas_call(
        kernel,
        out_shape=jax.ShapeDtypeStruct((Lp, Cout), jnp.bfloat16),
        grid_spec=pltpu.PrefetchScalarGridSpec(
            num_scalar_prefetch=0,
            grid=(Lp // tm, Cout // tn),
            in_specs=in_specs,
            out_specs=pl.BlockSpec((tm, tn), lambda i, j: (i, j)),
            scratch_shapes=[pltpu.VMEM((tm + halo, C), x2.dtype),
                            pltpu.SemaphoreType.DMA((1,))],
        ),
        compiler_params=pltpu.CompilerParams(
            dimension_semantics=("parallel", "parallel"),
            vmem_limit_bytes=_VMEM_LIMIT,
        ),
        cost_estimate=cost,
    )(*inputs)

    out = out[:L].reshape(N, Hp, Wp, Cout)[:, :H, :W, :]
    return out


def conv_bn(x, w_packed, bias, kh, kw, stride, padding, relu, residual=None):
    """x: NHWC bf16, w_packed: (KH*KW*Cin, Cout) with BN scale folded in."""
    N, H, W, C = x.shape
    Cout = w_packed.shape[1]
    OH = (H + 2 * padding - kh) // stride + 1
    OW = (W + 2 * padding - kw) // stride + 1

    if kh == 1 and kw == 1 and padding == 0:
        # 1x1 conv: no im2col, just a (strided) spatial subsample.
        assert residual is None
        xs = x[:, ::stride, ::stride, :] if stride > 1 else x
        xs = xs[:, :OH, :OW, :]
        out = matmul_affine(xs.reshape(N * OH * OW, C), w_packed, bias, relu=relu)
        return out.reshape(N, OH, OW, Cout)

    if stride == 1 and kh == kw and padding == kh // 2:
        # Implicit GEMM: no patch matrix materialized in HBM.
        return conv_implicit(x, w_packed, bias, kh, relu, residual)

    # TODO(synk): strided convs still materialize the im2col patch matrix.
    assert residual is None
    xp = jnp.pad(x, ((0, 0), (padding, padding), (padding, padding), (0, 0)))
    cols = [xp[:, i:i + stride * OH:stride, j:j + stride * OW:stride, :]
            for i in range(kh) for j in range(kw)]
    patches = jnp.stack(cols, axis=3).reshape(N * OH * OW, kh * kw * C)
    out = matmul_affine(patches, w_packed, bias, relu=relu)
    return out.reshape(N, OH, OW, Cout)


def maxpool_3x3_s2_p1(x):
    N, H, W, C = x.shape
    OH = (H + 2 - 3) // 2 + 1
    OW = (W + 2 - 3) // 2 + 1
    xp = jnp.pad(x, ((0, 0), (1, 1), (1, 1), (0, 0)), constant_values=-jnp.inf)
    cols = [xp[:, i:i + 2 * OH:2, j:j + 2 * OW:2, :]
            for i in range(3) for j in range(3)]
    M = N * OH * OW
    # TODO(synk): fetch the 3x3 windows straight from the padded NHWC tensor via
    # halo DMA instead of materializing the 9x patch stack in HBM.
    patches = jnp.stack(cols, axis=0).reshape(9, M, C)

    # Lane-dense output: fold pairs of spatial positions into lanes (max is
    # elementwise, so the layout change is free numerically).
    fold = 2 if (M % 2 == 0 and C * 2 <= 128) else 1
    Mf, Cf = M // fold, C * fold
    patches = patches.reshape(9, Mf, Cf)

    Mp = _round_up(Mf, 16)
    if Mp != Mf:
        patches = jnp.pad(patches, ((0, 0), (0, Mp - Mf), (0, 0)))
    tm = _pick_m_tile(Mp)

    out = pl.pallas_call(
        _maxpool_kernel,
        out_shape=jax.ShapeDtypeStruct((Mp, Cf), x.dtype),
        grid_spec=pltpu.PrefetchScalarGridSpec(
            num_scalar_prefetch=0,
            grid=(Mp // tm, 9),
            in_specs=[pl.BlockSpec((1, tm, Cf), lambda i, w: (w, i, 0))],
            out_specs=pl.BlockSpec((tm, Cf), lambda i, w: (i, 0)),
        ),
        compiler_params=pltpu.CompilerParams(
            dimension_semantics=("parallel", "arbitrary"),
            vmem_limit_bytes=_VMEM_LIMIT,
        ),
    )(patches)
    return out[:Mf].reshape(M, C).reshape(N, OH, OW, C)


def global_avgpool(x):
    N, H, W, C = x.shape
    hw = H * W
    x3 = x.reshape(N, hw, C)
    tc = 128 if C % 128 == 0 else C
    return pl.pallas_call(
        _avgpool_kernel,
        out_shape=jax.ShapeDtypeStruct((N, C), jnp.float32),
        grid_spec=pltpu.PrefetchScalarGridSpec(
            num_scalar_prefetch=0,
            grid=(C // tc,),
            in_specs=[pl.BlockSpec((N, hw, tc), lambda j: (0, 0, j))],
            out_specs=pl.BlockSpec((N, tc), lambda j: (0, j)),
        ),
        compiler_params=pltpu.CompilerParams(
            dimension_semantics=("parallel",),
            vmem_limit_bytes=_VMEM_LIMIT,
        ),
    )(x3)


# ----------------------------------------------------------------------------
# Parameters (deterministic synthetic init matching resnet18 shapes; conv
# weights pre-packed to (KH*KW*Cin, Cout) bf16 with the BN scale folded in)
# ----------------------------------------------------------------------------
def _conv_bn_init(key, cout, cin, kh, kw, eps=1e-5):
    fan_in = cin * kh * kw
    w = jax.random.normal(key, (cout, cin, kh, kw), jnp.float32) * jnp.sqrt(2.0 / fan_in)
    w = jnp.transpose(w, (2, 3, 1, 0)).reshape(kh * kw * cin, cout)
    # TODO(synk): BatchNorm is eval-mode with fresh-init running stats
    # (mean=0, var=1, gamma=1, beta=0); trained stats / .train() mode not modeled.
    gamma = jnp.ones((cout,), jnp.float32)
    beta = jnp.zeros((cout,), jnp.float32)
    running_mean = jnp.zeros((cout,), jnp.float32)
    running_var = jnp.ones((cout,), jnp.float32)
    scale = gamma / jnp.sqrt(running_var + eps)
    bias = beta - running_mean * scale
    w_folded = (w * scale[None, :]).astype(jnp.bfloat16)   # fold BN scale into W
    return w_folded, bias.astype(jnp.float32)


def init_resnet18_params(key, num_classes=2):
    keys = iter(jax.random.split(key, 64))
    p = {}
    p["conv1_w"], p["conv1_b"] = _conv_bn_init(next(keys), 64, 3, 7, 7)
    cfg = [("layer1", 64, 64, 1), ("layer2", 64, 128, 2),
           ("layer3", 128, 256, 2), ("layer4", 256, 512, 2)]
    for name, cin, cout, stride in cfg:
        blocks = []
        for b in range(2):
            bin_ = cin if b == 0 else cout
            s = stride if b == 0 else 1
            blk = {"stride": s}
            blk["w1"], blk["b1"] = _conv_bn_init(next(keys), cout, bin_, 3, 3)
            blk["w2"], blk["b2"] = _conv_bn_init(next(keys), cout, cout, 3, 3)
            if s != 1 or bin_ != cout:
                blk["dw"], blk["db"] = _conv_bn_init(next(keys), cout, bin_, 1, 1)
            blocks.append(blk)
        p[name] = blocks
    bound = 1.0 / jnp.sqrt(512.0)
    p["fc_w"] = jax.random.uniform(next(keys), (512, num_classes), jnp.float32, -bound, bound)
    p["fc_b"] = jax.random.uniform(next(keys), (num_classes,), jnp.float32, -bound, bound)
    return p


# ----------------------------------------------------------------------------
# Forward pass  (== ResNet18.forward(x, norm) -> (logits, feat))
# ----------------------------------------------------------------------------
def basic_block(x, blk):
    s = blk["stride"]
    if "dw" in blk:  # downsample path: 1x1 conv stride s + BN (no ReLU)
        identity = conv_bn(x, blk["dw"], blk["db"],
                           kh=1, kw=1, stride=s, padding=0, relu=False)
    else:
        identity = x
    out = conv_bn(x, blk["w1"], blk["b1"],
                  kh=3, kw=3, stride=s, padding=1, relu=True)
    # conv2 + BN + residual add + ReLU fused in the implicit-GEMM epilogue
    out = conv_bn(out, blk["w2"], blk["b2"],
                  kh=3, kw=3, stride=1, padding=1, relu=True, residual=identity)
    return out


def resnet18_forward(params, x_nchw, norm=False):
    x = jnp.transpose(x_nchw.astype(jnp.float32), (0, 2, 3, 1))  # NCHW -> NHWC
    x = x.astype(jnp.bfloat16)
    x = conv_bn(x, params["conv1_w"], params["conv1_b"],
                kh=7, kw=7, stride=2, padding=3, relu=True)
    x = maxpool_3x3_s2_p1(x)
    for name in ("layer1", "layer2", "layer3", "layer4"):
        for blk in params[name]:
            x = basic_block(x, blk)
    feat = global_avgpool(x)  # (N, 512) f32 == extractor(x).squeeze(-1).squeeze(-1)
    if norm:
        feat = feat / jnp.maximum(jnp.linalg.norm(feat, axis=1, keepdims=True), 1e-12)
    logits = matmul_affine(feat, params["fc_w"], params["fc_b"],
                           relu=False, out_dtype=jnp.float32,
                           compute_dtype=jnp.float32)
    return logits, feat


if __name__ == "__main__":
    key = jax.random.PRNGKey(0)
    pkey, xkey = jax.random.split(key)
    params = init_resnet18_params(pkey, num_classes=2)
    x = jax.random.normal(xkey, (2, 3, 32, 32), jnp.float32)  # small NCHW input
    logits, feat = resnet18_forward(params, x)
    jax.block_until_ready((logits, feat))
    assert logits.shape == (2, 2) and feat.shape == (2, 512)
    print("KERNEL_OK")
</pallas_src>

<mosaic_0001>
module attributes {stable_mosaic.version = 11 : i64} {
  func.func @kernel(%arg0: i32, %arg1: i32, %arg2: i32, %arg3: memref<256x256xbf16, #tpu.memory_space<vmem>>, %arg4: memref<256x64xbf16, #tpu.memory_space<vmem>>, %arg5: memref<1x64xf32, #tpu.memory_space<vmem>>, %arg6: memref<256x64xbf16, #tpu.memory_space<vmem>>, %arg7: memref<256x64xf32, #tpu.memory_space<vmem>>) attributes {dimension_semantics = [#tpu.dimension_semantics<parallel>, #tpu.dimension_semantics<parallel>, #tpu.dimension_semantics<arbitrary>], iteration_bounds = array<i64: 2, 1, 1>, scalar_prefetch = 0 : i64, scratch_operands = 1 : i64, tpu.core_type = #tpu.core_type<tc>, window_params = [{transform_indices = @transform_0, window_bounds = array<i64: 256, 256>}, {transform_indices = @transform_1, window_bounds = array<i64: 256, 64>}, {transform_indices = @transform_2, window_bounds = array<i64: 1, 64>}, {transform_indices = @transform_3, window_bounds = array<i64: 256, 64>}]} {
    %c0_i32 = arith.constant 0 : i32
    %0 = arith.cmpi eq, %arg2, %c0_i32 : i32
    %1 = arith.extui %0 : i1 to i32
    %c0_i32_0 = arith.constant 0 : i32
    %2 = arith.cmpi ne, %1, %c0_i32_0 : i32
    scf.if %2 {
      %cst_10 = arith.constant 0.000000e+00 : f32
      %12 = vector.broadcast %cst_10 : f32 to vector<256x64xf32>
      %c0_11 = arith.constant 0 : index
      %c0_12 = arith.constant 0 : index
      %13 = vector.load %arg7[%c0_11, %c0_12] : memref<256x64xf32, #tpu.memory_space<vmem>>, vector<256x64xf32>
      tpu.vector_store %arg7[%c0_11, %c0_12], %12 {strides = array<i32>} : memref<256x64xf32, #tpu.memory_space<vmem>>, vector<256x64xf32>,
    } else {
    }
    %c0 = arith.constant 0 : index
    %c0_1 = arith.constant 0 : index
    %3 = vector.load %arg7[%c0, %c0_1] : memref<256x64xf32, #tpu.memory_space<vmem>>, vector<256x64xf32>
    %c0_2 = arith.constant 0 : index
    %c0_3 = arith.constant 0 : index
    %4 = vector.load %arg3[%c0_2, %c0_3] : memref<256x256xbf16, #tpu.memory_space<vmem>>, vector<256x256xbf16>
    %c0_4 = arith.constant 0 : index
    %c0_5 = arith.constant 0 : index
    %5 = vector.load %arg4[%c0_4, %c0_5] : memref<256x64xbf16, #tpu.memory_space<vmem>>, vector<256x64xbf16>
    %cst = arith.constant dense<0.000000e+00> : vector<256x64xf32>
    %6 = tpu.matmul %4, %5, %cst {dimension_numbers = #tpu.dot_dimension_numbers<[1], [0], [0], [1], [0, 0, 1, 1], [], []>} : vector<256x256xbf16>, vector<256x64xbf16>, vector<256x64xf32> -> vector<256x64xf32>
    %7 = arith.addf %3, %6 : vector<256x64xf32>
    %c0_6 = arith.constant 0 : index
    %c0_7 = arith.constant 0 : index
    %8 = vector.load %arg7[%c0_6, %c0_7] : memref<256x64xf32, #tpu.memory_space<vmem>>, vector<256x64xf32>
    tpu.vector_store %arg7[%c0_6, %c0_7], %7 {strides = array<i32>} : memref<256x64xf32, #tpu.memory_space<vmem>>, vector<256x64xf32>,
    %c0_i32_8 = arith.constant 0 : i32
    %9 = arith.cmpi eq, %arg2, %c0_i32_8 : i32
    %10 = arith.extui %9 : i1 to i32
    %c0_i32_9 = arith.constant 0 : i32
    %11 = arith.cmpi ne, %10, %c0_i32_9 : i32
    scf.if %11 {
      %c0_10 = arith.constant 0 : index
      %c0_11 = arith.constant 0 : index
      %12 = vector.load %arg7[%c0_10, %c0_11] : memref<256x64xf32, #tpu.memory_space<vmem>>, vector<256x64xf32>
      %c0_12 = arith.constant 0 : index
      %c0_13 = arith.constant 0 : index
      %13 = vector.load %arg5[%c0_12, %c0_13] : memref<1x64xf32, #tpu.memory_space<vmem>>, vector<1x64xf32>
      %14 = vector.broadcast %13 : vector<1x64xf32> to vector<256x64xf32>
      %15 = arith.addf %12, %14 : vector<256x64xf32>
      %cst_14 = arith.constant 0.000000e+00 : f32
      %16 = vector.broadcast %cst_14 : f32 to vector<256x64xf32>
      %17 = arith.maximumf %15, %16 : vector<256x64xf32>
      %18 = arith.truncf %17 : vector<256x64xf32> to vector<256x64xbf16>
      %c0_15 = arith.constant 0 : index
      %c0_16 = arith.constant 0 : index
      %19 = vector.load %arg6[%c0_15, %c0_16] : memref<256x64xbf16, #tpu.memory_space<vmem>>, vector<256x64xbf16>
      tpu.vector_store %arg6[%c0_15, %c0_16], %18 {strides = array<i32>} : memref<256x64xbf16, #tpu.memory_space<vmem>>, vector<256x64xbf16>,
    } else {
    }
    return
  }
  func.func @transform_0(%arg0: i32, %arg1: i32, %arg2: i32) -> (i32, i32) {
    %c0_i32 = arith.constant 0 : i32
    return %arg0, %arg2 : i32, i32
  }
  func.func @transform_1(%arg0: i32, %arg1: i32, %arg2: i32) -> (i32, i32) {
    %c0_i32 = arith.constant 0 : i32
    return %arg2, %arg1 : i32, i32
  }
  func.func @transform_2(%arg0: i32, %arg1: i32, %arg2: i32) -> (i32, i32) {
    %c0_i32 = arith.constant 0 : i32
    %c0_i32_0 = arith.constant 0 : i32
    return %c0_i32, %arg1 : i32, i32
  }
  func.func @transform_3(%arg0: i32, %arg1: i32, %arg2: i32) -> (i32, i32) {
    %c0_i32 = arith.constant 0 : i32
    return %arg0, %arg1 : i32, i32
  }
}

</mosaic_0001>

<llo_original>
// kernel: tpu_custom_call.1
$region0: #{tpu_custom_call.1}
  #allocation0 [shape = 'u32[]', space=smem, size = 0x4, offset = 0x4, fixed_abs, tag = 'smem constant byte address 0x4 - core index']
  #allocation1 [shape = 'u32[72,128]{1,0:T(1,128)}', space=vmem, size = 0x9000, scoped, tag = 'internal scratch']
  #allocation2 [shape = 'f32[256,64]{1,0:T(8,128)}', space=vmem, size = 0x20000, scoped, tag = 'scratch operand']
  %s0 = inlined_call_operand.hbm [shape: bf16[512,256], index: 0, kind: input, shape index: {}]
  %s1 = inlined_call_operand.vmem [shape: bf16[256,64], index: 1, kind: input, shape index: {}]
  %s2 = inlined_call_operand.vmem [shape: f32[1,64], index: 2, kind: input, shape index: {}]
  %s3 = inlined_call_operand.vmem [shape: bf16[512,64], index: 3, kind: output, shape index: {}]
  %s4 = sld [smem:[#allocation0]]
  $region57: #{tpu_custom_call.1} parent=0
    _
  %s6 = ssub.s32 1, %s4
  %s7 = scalar_select 0, %s6, %s4
  $region1: #{tpu_custom_call.1} parent=0
    #allocation3 [shape = 'u8[262144]{0}', space=vmem, size = 0x40000, scoped, tag = 'input window, operand 0']
    #allocation4 [shape = 's32[2]{0}', space=sflag, size = 0x8, scoped, tag = 'scoped memory for tpu_custom_call.1']
    %8 = vsyncpa [#allocation4], 0
    %s9 = scalar_lea.sflag [#allocation4], 1
    %10 = vsyncpa %s9, 0
    loop: start=0, step=1, limit=4
    $region2: #{tpu_custom_call.1} parent=1 // loop_pre_header
      _
    $region3: #{tpu_custom_call.1} parent=1 // loop_header
      %s12 = sphi 0, %s16
      %p13 = scmp.ge.s32.totalorder %s12, 4
      %s19 = sphi 0, %s38
      %s20 = sphi 0, %s34
      %s21 = sphi 0, %s30
      %s22 = sphi 0, %s19
      %s23 = sphi 0, %s20
      %s24 = sphi 0, %s21
      %s25 = sphi 0, %s22
      %s26 = sphi 0, %s23
      %s27 = sphi 0, %s24
      %s43 = sphi 0, %s45
      %s46 = sphi 0, %s43
      %s47 = sphi 0, %s46
      %s63 = sphi 0, %s47
      %s71 = sphi 0, %s73
      %s74 = sphi 0, %s71
      %s75 = sphi 0, %s74
      %s91 = sphi 0, %s75
      %s97 = sphi 0, %s99
      %s100 = sphi 0, %s97
      %s101 = sphi 0, %s100
      %s117 = sphi 0, %s101
      %s125 = sphi 0, %s127
      %s128 = sphi 0, %s125
      %s129 = sphi 0, %s128
      %s145 = sphi 0, %s129
    $region4: #{tpu_custom_call.1} parent=1 // loop_header_branch
      %15 = sbr.rel (%p13) target = $region8
    $region5: #{tpu_custom_call.1} parent=1 // loop_body
      %s17 = ssub.s32 %s12, 1
      %s18 = ssub.s32 %s12, 2
      %s28 = sadd.s32 1, %s21
      %p29 = scmp.ge.s32.totalorder %s28, 1
      %s30 = scalar_select %p29, 0, %s28
      %s31 = sadd.s32 1, %s20
      %s32 = scalar_select %p29, %s31, %s20
      %p33 = scmp.ge.s32.totalorder %s32, 1
      %s34 = scalar_select %p33, 0, %s32
      %s35 = sadd.s32 1, %s19
      %s36 = scalar_select %p33, %s35, %s19
      %p37 = scmp.ge.s32.totalorder %s36, 2
      %s38 = scalar_select %p37, 0, %s36
      %s39 = ssub.s32 %s19, %s38
      %s40 = ssub.s32 %s21, %s30
      %s41 = sor.u32 %s39, %s40
      %p42 = scmp.eq.s32.totalorder %s41, 0
      %s44 = sadd.s32 %s43, 1
      %s45 = scalar_select %p42, %s43, %s44
      %p48 = pneg %p42
      %p49 = scmp.eq.s32.totalorder %s12, 1
      %p50 = por %p48, %p49
      %p51 = scmp.ne.s32.totalorder %s43, %s46
      %p52 = scmp.eq.s32.totalorder %s12, 0
      %p53 = por %p51, %p52
      %p54 = scmp.ne.s32.totalorder %s43, %s46
      %p55 = scmp.eq.s32.totalorder %s17, 1
      %p56 = por %p54, %p55
      %p57 = scmp.ne.s32.totalorder %s46, %s47
      %p58 = scmp.eq.s32.totalorder %s17, 0
      %p59 = por %p57, %p58
      %p60 = scmp.ne.s32.totalorder %s46, %s47
      %p61 = scmp.eq.s32.totalorder %s18, 1
      %p62 = por %p60, %p61
      %p64 = scmp.ne.s32.totalorder %s47, %s63
      %p65 = scmp.eq.s32.totalorder %s18, 0
      %p66 = por %p64, %p65
      %s67 = ssub.s32 %s21, %s30
      %s68 = ssub.s32 %s20, %s34
      %s69 = sor.u32 %s67, %s68
      %p70 = scmp.eq.s32.totalorder %s69, 0
      %s72 = sadd.s32 %s71, 1
      %s73 = scalar_select %p70, %s71, %s72
      %p76 = pneg %p70
      %p77 = scmp.eq.s32.totalorder %s12, 1
      %p78 = por %p76, %p77
      %p79 = scmp.ne.s32.totalorder %s71, %s74
      %p80 = scmp.eq.s32.totalorder %s12, 0
      %p81 = por %p79, %p80
      %p82 = scmp.ne.s32.totalorder %s71, %s74
      %p83 = scmp.eq.s32.totalorder %s17, 1
      %p84 = por %p82, %p83
      %p85 = scmp.ne.s32.totalorder %s74, %s75
      %p86 = scmp.eq.s32.totalorder %s17, 0
      %p87 = por %p85, %p86
      %p88 = scmp.ne.s32.totalorder %s74, %s75
      %p89 = scmp.eq.s32.totalorder %s18, 1
      %p90 = por %p88, %p89
      %p92 = scmp.ne.s32.totalorder %s75, %s91
      %p93 = scmp.eq.s32.totalorder %s18, 0
      %p94 = por %p92, %p93
      %s95 = ssub.s32 %s20, %s34
      %p96 = scmp.eq.s32.totalorder %s95, 0
      %s98 = sadd.s32 %s97, 1
      %s99 = scalar_select %p96, %s97, %s98
      %p102 = pneg %p96
      %p103 = scmp.eq.s32.totalorder %s12, 1
      %p104 = por %p102, %p103
      %p105 = scmp.ne.s32.totalorder %s97, %s100
      %p106 = scmp.eq.s32.totalorder %s12, 0
      %p107 = por %p105, %p106
      %p108 = scmp.ne.s32.totalorder %s97, %s100
      %p109 = scmp.eq.s32.totalorder %s17, 1
      %p110 = por %p108, %p109
      %p111 = scmp.ne.s32.totalorder %s100, %s101
      %p112 = scmp.eq.s32.totalorder %s17, 0
      %p113 = por %p111, %p112
      %p114 = scmp.ne.s32.totalorder %s100, %s101
      %p115 = scmp.eq.s32.totalorder %s18, 1
      %p116 = por %p114, %p115
      %p118 = scmp.ne.s32.totalorder %s101, %s117
      %p119 = scmp.eq.s32.totalorder %s18, 0
      %p120 = por %p118, %p119
      %s121 = ssub.s32 %s19, %s38
      %s122 = ssub.s32 %s20, %s34
      %s123 = sor.u32 %s121, %s122
      %p124 = scmp.eq.s32.totalorder %s123, 0
      %s126 = sadd.s32 %s125, 1
      %s127 = scalar_select %p124, %s125, %s126
      %p130 = pneg %p124
      %p131 = scmp.eq.s32.totalorder %s12, 1
      %p132 = por %p130, %p131
      %p133 = scmp.ne.s32.totalorder %s125, %s128
      %p134 = scmp.eq.s32.totalorder %s12, 0
      %p135 = por %p133, %p134
      %p136 = scmp.ne.s32.totalorder %s125, %s128
      %p137 = scmp.eq.s32.totalorder %s17, 1
      %p138 = por %p136, %p137
      %p139 = scmp.ne.s32.totalorder %s128, %s129
      %p140 = scmp.eq.s32.totalorder %s17, 0
      %p141 = por %p139, %p140
      %p142 = scmp.ne.s32.totalorder %s128, %s129
      %p143 = scmp.eq.s32.totalorder %s18, 1
      %p144 = por %p142, %p143
      %p146 = scmp.ne.s32.totalorder %s129, %s145
      %p147 = scmp.eq.s32.totalorder %s18, 0
      %p148 = por %p146, %p147
      %p149 = scmp.le.s32.totalorder 1, %s12
      %p150 = scmp.lt.s32.totalorder %s12, 3
      %p151 = pnand %p149, %p150
      %p152 = pneg %p151
      // Predicated region
      $region9: #{tpu_custom_call.1} parent=5 // pred_check
        _
      $region10: #{tpu_custom_call.1} parent=5 // pred_check_branch
        %154 = sbr.rel (%p151) target = $region12
      $region11: #{tpu_custom_call.1} parent=5 // pred_region
        %s155 = ssub.s32 %s12, 1
        // Predicated region
        $region13: #{tpu_custom_call.1} parent=11 // pred_check
          %p156 = pneg %p87
        $region14: #{tpu_custom_call.1} parent=11 // pred_check_branch
          %158 = sbr.rel (%p156) target = $region16
        $region15: #{tpu_custom_call.1} parent=11 // pred_region
          %s159 = smul.u32 32, %s24
          %p160 = scmp.lt.s32.totalorder %s159, 31
          %s161 = scalar_select %p160, %s159, 31
          %p162 = scmp.lt.s32.totalorder %s23, 0
          %s163 = scalar_select %p162, %s23, 0
          %s164 = sadd.s32 %s163, %s161
          %s165 = smul.addr %s164, 4
          %s166 = scalar_lea.vmem %s1, %s165
          %s167 = smul.u32 32, %s24
        $region16: #{tpu_custom_call.1} parent=11 // pred_fallthru
          _
        // Predicated region
        $region17: #{tpu_custom_call.1} parent=11 // pred_check
          %p168 = pneg %p113
        $region18: #{tpu_custom_call.1} parent=11 // pred_check_branch
          %170 = sbr.rel (%p168) target = $region20
        $region19: #{tpu_custom_call.1} parent=11 // pred_region
          %p171 = scmp.lt.s32.totalorder %s23, 0
          %s172 = scalar_select %p171, %s23, 0
          %s173 = scalar_lea.vmem %s2, %s172
        $region20: #{tpu_custom_call.1} parent=11 // pred_fallthru
          _
      $region12: #{tpu_custom_call.1} parent=5 // pred_fallthru
        _
      %p174 = scmp.lt.s32.totalorder %s12, 2
      // Predicated region
      $region21: #{tpu_custom_call.1} parent=5 // pred_check
        %p175 = pneg %p174
      $region22: #{tpu_custom_call.1} parent=5 // pred_check_branch
        %177 = sbr.rel (%p175) target = $region24
      $region23: #{tpu_custom_call.1} parent=5 // pred_region
        // Predicated region
        $region25: #{tpu_custom_call.1} parent=23 // pred_check
          %p178 = pneg %p53
        $region26: #{tpu_custom_call.1} parent=23 // pred_check_branch
          %180 = sbr.rel (%p178) target = $region28
        $region27: #{tpu_custom_call.1} parent=23 // pred_region
          %s181 = sand.u32 %s43, 1
          %s182 = scalar_lea.sflag [#allocation4], %s181
          %s183 = sand.u32 %s43, 1
          %s184 = smul.addr %s183, 256
          %s185 = scalar_lea.vmem [#allocation3], %s184
          %s186 = smul.u32 32, %s19
          %s187 = smul.u32 2, %s21
          %189 = vsyncadd %s182, 0
          %s190 = smul.addr %s186, 2
          %s191 = sadd.s32 %s187, %s190
          %s192 = smul.addr %s191, 4
          %s193 = scalar_lea.hbm %s0, %s192
          %s194 = sshll.u32 %s193, 4
          %s195 = int_to_ptr.hbm [resolvable:$true] %s194
          %s196 = sshll.u32 %s185, 4
          %s197 = int_to_ptr.vmem [resolvable:$true] %s196
          %202 = dma.hbm_to_vmem [thread:$0]  %s195, 4096, %s197, %s182, 128, 128, 8
        $region28: #{tpu_custom_call.1} parent=23 // pred_fallthru
          _
      $region24: #{tpu_custom_call.1} parent=5 // pred_fallthru
        _
      %p203 = scmp.le.s32.totalorder 1, %s12
      %p204 = scmp.lt.s32.totalorder %s12, 3
      %p205 = pnand %p203, %p204
      %p206 = pneg %p205
      // Predicated region
      $region29: #{tpu_custom_call.1} parent=5 // pred_check
        _
      $region30: #{tpu_custom_call.1} parent=5 // pred_check_branch
        %208 = sbr.rel (%p205) target = $region32
      $region31: #{tpu_custom_call.1} parent=5 // pred_region
        %s209 = ssub.s32 %s12, 1
        %s210 = sand.u32 %s46, 1
        %s211 = scalar_lea.sflag [#allocation4], %s210
        %s212 = sand.u32 %s46, 1
        %s213 = smul.addr %s212, 256
        %s214 = scalar_lea.vmem [#allocation3], %s213
        // Predicated region
        $region33: #{tpu_custom_call.1} parent=31 // pred_check
          %p215 = pneg %p59
        $region34: #{tpu_custom_call.1} parent=31 // pred_check_branch
          %217 = sbr.rel (%p215) target = $region36
        $region35: #{tpu_custom_call.1} parent=31 // pred_region
          %219 = dma.done %s211, 4096
        $region36: #{tpu_custom_call.1} parent=31 // pred_fallthru
          _
        %s220 = sand.u32 %s46, 1
        %s221 = scalar_lea.sflag [#allocation4], %s220
        %s222 = sand.u32 %s46, 1
        %s223 = smul.addr %s222, 256
        %s224 = scalar_lea.vmem [#allocation3], %s223
        %p225 = pneg %p59
        %p226 = pneg %p56
        %s227 = smul.u32 32, %s24
        %p228 = scmp.lt.s32.totalorder %s227, 31
        %s229 = scalar_select %p228, %s227, 31
        %p230 = scmp.lt.s32.totalorder %s23, 0
        %s231 = scalar_select %p230, %s23, 0
        %s232 = sadd.s32 %s231, %s229
        %s233 = smul.addr %s232, 4
        %s234 = scalar_lea.vmem %s1, %s233
        %p235 = pneg %p87
        %p236 = pneg %p84
        %p237 = scmp.lt.s32.totalorder %s23, 0
        %s238 = scalar_select %p237, %s23, 0
        %s239 = scalar_lea.vmem %s2, %s238
        %p240 = pneg %p113
        %p241 = pneg %p110
        %p242 = pneg %p141
        %p243 = pneg %p138
        %s244 = smul.u32 32, %s22
        %p245 = scmp.lt.s32.totalorder %s244, 63
        %s246 = scalar_select %p245, %s244, 63
        %p247 = scmp.lt.s32.totalorder %s23, 0
        %s248 = scalar_select %p247, %s23, 0
        %s249 = sadd.s32 %s248, %s246
        %s250 = smul.addr %s249, 4
        %s251 = scalar_lea.vmem %s3, %s250
        %s252 = smul.u32 32, %s22
        %s253 = smul.u32 2, %s24
        %s254 = smul.u32 32, %s24
        %p255 = scmp.lt.s32.totalorder %s254, 31
        %s256 = scalar_select %p255, %s254, 31
        %p257 = scmp.lt.s32.totalorder %s23, 0
        %s258 = scalar_select %p257, %s23, 0
        %s259 = sadd.s32 %s258, %s256
        %s260 = smul.addr %s259, 4
        %s261 = scalar_lea.vmem %s1, %s260
        %s262 = smul.u32 32, %s24
        %p263 = scmp.lt.s32.totalorder %s23, 0
        %s264 = scalar_select %p263, %s23, 0
        %s265 = scalar_lea.vmem %s2, %s264
        %s266 = smul.u32 32, %s22
        %p267 = scmp.lt.s32.totalorder %s266, 63
        %s268 = scalar_select %p267, %s266, 63
        %p269 = scmp.lt.s32.totalorder %s23, 0
        %s270 = scalar_select %p269, %s23, 0
        %s271 = sadd.s32 %s270, %s268
        %s272 = smul.addr %s271, 4
        %s273 = scalar_lea.vmem %s3, %s272
        %s274 = smul.u32 32, %s22
        %p275 = scmp.eq.s32.totalorder %s24, 0
        // Predicated region
        $region37: #{tpu_custom_call.1} parent=31 // pred_check
          %p276 = pneg %p275
        $region38: #{tpu_custom_call.1} parent=31 // pred_check_branch
          %278 = sbr.rel (%p276) target = $region40
        $region39: #{tpu_custom_call.1} parent=31 // pred_region
          %vm279 = vcmask 523264
          %280 = vst.msk [vmem:[#allocation2] sm:$0xff] %vm279, 0.0
          %281 = vst.msk [vmem:[#allocation2 + $0x8] sm:$0xff] %vm279, 0.0
          %282 = vst.msk [vmem:[#allocation2 + $0x10] sm:$0xff] %vm279, 0.0
          %283 = vst.msk [vmem:[#allocation2 + $0x18] sm:$0xff] %vm279, 0.0
          %284 = vst.msk [vmem:[#allocation2 + $0x20] sm:$0xff] %vm279, 0.0
          %285 = vst.msk [vmem:[#allocation2 + $0x28] sm:$0xff] %vm279, 0.0
          %286 = vst.msk [vmem:[#allocation2 + $0x30] sm:$0xff] %vm279, 0.0
          %287 = vst.msk [vmem:[#allocation2 + $0x38] sm:$0xff] %vm279, 0.0
          %288 = vst.msk [vmem:[#allocation2 + $0x40] sm:$0xff] %vm279, 0.0
          %289 = vst.msk [vmem:[#allocation2 + $0x48] sm:$0xff] %vm279, 0.0
          %290 = vst.msk [vmem:[#allocation2 + $0x50] sm:$0xff] %vm279, 0.0
          %291 = vst.msk [vmem:[#allocation2 + $0x58] sm:$0xff] %vm279, 0.0
          %292 = vst.msk [vmem:[#allocation2 + $0x60] sm:$0xff] %vm279, 0.0
          %293 = vst.msk [vmem:[#allocation2 + $0x68] sm:$0xff] %vm279, 0.0
          %294 = vst.msk [vmem:[#allocation2 + $0x70] sm:$0xff] %vm279, 0.0
          %295 = vst.msk [vmem:[#allocation2 + $0x78] sm:$0xff] %vm279, 0.0
          %296 = vst.msk [vmem:[#allocation2 + $0x80] sm:$0xff] %vm279, 0.0
          %297 = vst.msk [vmem:[#allocation2 + $0x88] sm:$0xff] %vm279, 0.0
          %298 = vst.msk [vmem:[#allocation2 + $0x90] sm:$0xff] %vm279, 0.0
          %299 = vst.msk [vmem:[#allocation2 + $0x98] sm:$0xff] %vm279, 0.0
          %300 = vst.msk [vmem:[#allocation2 + $0xa0] sm:$0xff] %vm279, 0.0
          %301 = vst.msk [vmem:[#allocation2 + $0xa8] sm:$0xff] %vm279, 0.0
          %302 = vst.msk [vmem:[#allocation2 + $0xb0] sm:$0xff] %vm279, 0.0
          %303 = vst.msk [vmem:[#allocation2 + $0xb8] sm:$0xff] %vm279, 0.0
          %304 = vst.msk [vmem:[#allocation2 + $0xc0] sm:$0xff] %vm279, 0.0
          %305 = vst.msk [vmem:[#allocation2 + $0xc8] sm:$0xff] %vm279, 0.0
          %306 = vst.msk [vmem:[#allocation2 + $0xd0] sm:$0xff] %vm279, 0.0
          %307 = vst.msk [vmem:[#allocation2 + $0xd8] sm:$0xff] %vm279, 0.0
          %308 = vst.msk [vmem:[#allocation2 + $0xe0] sm:$0xff] %vm279, 0.0
          %309 = vst.msk [vmem:[#allocation2 + $0xe8] sm:$0xff] %vm279, 0.0
          %310 = vst.msk [vmem:[#allocation2 + $0xf0] sm:$0xff] %vm279, 0.0
          %311 = vst.msk [vmem:[#allocation2 + $0xf8] sm:$0xff] %vm279, 0.0
        $region40: #{tpu_custom_call.1} parent=31 // pred_fallthru
          _
        %v312 = vld [vmem:[#allocation2] sm:$0xff]
        %v313 = vld [vmem:[#allocation2 + $0x8] sm:$0xff]
        %v314 = vld [vmem:[#allocation2 + $0x10] sm:$0xff]
        %v315 = vld [vmem:[#allocation2 + $0x18] sm:$0xff]
        %v316 = vld [vmem:[#allocation2 + $0x20] sm:$0xff]
        %v317 = vld [vmem:[#allocation2 + $0x28] sm:$0xff]
        %v318 = vld [vmem:[#allocation2 + $0x30] sm:$0xff]
        %v319 = vld [vmem:[#allocation2 + $0x38] sm:$0xff]
        %v320 = vld [vmem:[#allocation2 + $0x40] sm:$0xff]
        %v321 = vld [vmem:[#allocation2 + $0x48] sm:$0xff]
        %v322 = vld [vmem:[#allocation2 + $0x50] sm:$0xff]
        %v323 = vld [vmem:[#allocation2 + $0x58] sm:$0xff]
        %v324 = vld [vmem:[#allocation2 + $0x60] sm:$0xff]
        %v325 = vld [vmem:[#allocation2 + $0x68] sm:$0xff]
        %v326 = vld [vmem:[#allocation2 + $0x70] sm:$0xff]
        %v327 = vld [vmem:[#allocation2 + $0x78] sm:$0xff]
        %v328 = vld [vmem:[#allocation2 + $0x80] sm:$0xff]
        %v329 = vld [vmem:[#allocation2 + $0x88] sm:$0xff]
        %v330 = vld [vmem:[#allocation2 + $0x90] sm:$0xff]
        %v331 = vld [vmem:[#allocation2 + $0x98] sm:$0xff]
        %v332 = vld [vmem:[#allocation2 + $0xa0] sm:$0xff]
        %v333 = vld [vmem:[#allocation2 + $0xa8] sm:$0xff]
        %v334 = vld [vmem:[#allocation2 + $0xb0] sm:$0xff]
        %v335 = vld [vmem:[#allocation2 + $0xb8] sm:$0xff]
        %v336 = vld [vmem:[#allocation2 + $0xc0] sm:$0xff]
        %v337 = vld [vmem:[#allocation2 + $0xc8] sm:$0xff]
        %v338 = vld [vmem:[#allocation2 + $0xd0] sm:$0xff]
        %v339 = vld [vmem:[#allocation2 + $0xd8] sm:$0xff]
        %v340 = vld [vmem:[#allocation2 + $0xe0] sm:$0xff]
        %v341 = vld [vmem:[#allocation2 + $0xe8] sm:$0xff]
        %v342 = vld [vmem:[#allocation2 + $0xf0] sm:$0xff]
        %v343 = vld [vmem:[#allocation2 + $0xf8] sm:$0xff]
        %v344 = vld [vmem:[%s214] sm:$0xff]
        %v345 = vld [vmem:[%s214 + $0x8] sm:$0xff]
        %v346 = vld [vmem:[%s214 + $0x10] sm:$0xff]
        %v347 = vld [vmem:[%s214 + $0x18] sm:$0xff]
        %v348 = vld [vmem:[%s214 + $0x20] sm:$0xff]
        %v349 = vld [vmem:[%s214 + $0x28] sm:$0xff]
        %v350 = vld [vmem:[%s214 + $0x30] sm:$0xff]
        %v351 = vld [vmem:[%s214 + $0x38] sm:$0xff]
        %v352 = vld [vmem:[%s214 + $0x40] sm:$0xff]
        %v353 = vld [vmem:[%s214 + $0x48] sm:$0xff]
        %v354 = vld [vmem:[%s214 + $0x50] sm:$0xff]
        %v355 = vld [vmem:[%s214 + $0x58] sm:$0xff]
        %v356 = vld [vmem:[%s214 + $0x60] sm:$0xff]
        %v357 = vld [vmem:[%s214 + $0x68] sm:$0xff]
        %v358 = vld [vmem:[%s214 + $0x70] sm:$0xff]
        %v359 = vld [vmem:[%s214 + $0x78] sm:$0xff]
        %v360 = vld [vmem:[%s214 + $0x80] sm:$0xff]
        %v361 = vld [vmem:[%s214 + $0x88] sm:$0xff]
        %v362 = vld [vmem:[%s214 + $0x90] sm:$0xff]
        %v363 = vld [vmem:[%s214 + $0x98] sm:$0xff]
        %v364 = vld [vmem:[%s214 + $0xa0] sm:$0xff]
        %v365 = vld [vmem:[%s214 + $0xa8] sm:$0xff]
        %v366 = vld [vmem:[%s214 + $0xb0] sm:$0xff]
        %v367 = vld [vmem:[%s214 + $0xb8] sm:$0xff]
        %v368 = vld [vmem:[%s214 + $0xc0] sm:$0xff]
        %v369 = vld [vmem:[%s214 + $0xc8] sm:$0xff]
        %v370 = vld [vmem:[%s214 + $0xd0] sm:$0xff]
        %v371 = vld [vmem:[%s214 + $0xd8] sm:$0xff]
        %v372 = vld [vmem:[%s214 + $0xe0] sm:$0xff]
        %v373 = vld [vmem:[%s214 + $0xe8] sm:$0xff]
        %v374 = vld [vmem:[%s214 + $0xf0] sm:$0xff]
        %v375 = vld [vmem:[%s214 + $0xf8] sm:$0xff]
        %v376 = vld [vmem:[%s261] sm:$0xf]
        %v377 = vld [vmem:[%s261 + $0x4] sm:$0xf]
        %v378 = vld [vmem:[%s261 + $0x8] sm:$0xf]
        %v379 = vld [vmem:[%s261 + $0xc] sm:$0xf]
        %v380 = vld [vmem:[%s261 + $0x10] sm:$0xf]
        %v381 = vld [vmem:[%s261 + $0x14] sm:$0xf]
        %v382 = vld [vmem:[%s261 + $0x18] sm:$0xf]
        %v383 = vld [vmem:[%s261 + $0x1c] sm:$0xf]
        %v384 = vld [vmem:[%s261 + $0x20] sm:$0xf]
        %v385 = vld [vmem:[%s261 + $0x24] sm:$0xf]
        %v386 = vld [vmem:[%s261 + $0x28] sm:$0xf]
        %v387 = vld [vmem:[%s261 + $0x2c] sm:$0xf]
        %v388 = vld [vmem:[%s261 + $0x30] sm:$0xf]
        %v389 = vld [vmem:[%s261 + $0x34] sm:$0xf]
        %v390 = vld [vmem:[%s261 + $0x38] sm:$0xf]
        %v391 = vld [vmem:[%s261 + $0x3c] sm:$0xf]
        %v392 = vld [vmem:[%s261 + $0x40] sm:$0xf]
        %v393 = vld [vmem:[%s261 + $0x44] sm:$0xf]
        %v394 = vld [vmem:[%s261 + $0x48] sm:$0xf]
        %v395 = vld [vmem:[%s261 + $0x4c] sm:$0xf]
        %v396 = vld [vmem:[%s261 + $0x50] sm:$0xf]
        %v397 = vld [vmem:[%s261 + $0x54] sm:$0xf]
        %v398 = vld [vmem:[%s261 + $0x58] sm:$0xf]
        %v399 = vld [vmem:[%s261 + $0x5c] sm:$0xf]
        %v400 = vld [vmem:[%s261 + $0x60] sm:$0xf]
        %v401 = vld [vmem:[%s261 + $0x64] sm:$0xf]
        %v402 = vld [vmem:[%s261 + $0x68] sm:$0xf]
        %v403 = vld [vmem:[%s261 + $0x6c] sm:$0xf]
        %v404 = vld [vmem:[%s261 + $0x70] sm:$0xf]
        %v405 = vld [vmem:[%s261 + $0x74] sm:$0xf]
        %v406 = vld [vmem:[%s261 + $0x78] sm:$0xf]
        %v407 = vld [vmem:[%s261 + $0x7c] sm:$0xf]
        %v440 = vunpack.c.l.b16 %v344
        %v441 = vunpack.c.h.b16 %v344
        %v442 = vunpack.c.l.b16 %v345
        %v443 = vunpack.c.h.b16 %v345
        %v444 = vunpack.c.l.b16 %v346
        %v445 = vunpack.c.h.b16 %v346
        %v446 = vunpack.c.l.b16 %v347
        %v447 = vunpack.c.h.b16 %v347
        %v448 = vunpack.c.l.b16 %v348
        %v449 = vunpack.c.h.b16 %v348
        %v450 = vunpack.c.l.b16 %v349
        %v451 = vunpack.c.h.b16 %v349
        %v452 = vunpack.c.l.b16 %v350
        %v453 = vunpack.c.h.b16 %v350
        %v454 = vunpack.c.l.b16 %v351
        %v455 = vunpack.c.h.b16 %v351
        %v456 = vunpack.c.l.b16 %v352
        %v457 = vunpack.c.h.b16 %v352
        %v458 = vunpack.c.l.b16 %v353
        %v459 = vunpack.c.h.b16 %v353
        %v460 = vunpack.c.l.b16 %v354
        %v461 = vunpack.c.h.b16 %v354
        %v462 = vunpack.c.l.b16 %v355
        %v463 = vunpack.c.h.b16 %v355
        %v464 = vunpack.c.l.b16 %v356
        %v465 = vunpack.c.h.b16 %v356
        %v466 = vunpack.c.l.b16 %v357
        %v467 = vunpack.c.h.b16 %v357
        %v468 = vunpack.c.l.b16 %v358
        %v469 = vunpack.c.h.b16 %v358
        %v470 = vunpack.c.l.b16 %v359
        %v471 = vunpack.c.h.b16 %v359
        %v472 = vunpack.c.l.b16 %v360
        %v473 = vunpack.c.h.b16 %v360
        %v474 = vunpack.c.l.b16 %v361
        %v475 = vunpack.c.h.b16 %v361
        %v476 = vunpack.c.l.b16 %v362
        %v477 = vunpack.c.h.b16 %v362
        %v478 = vunpack.c.l.b16 %v363
        %v479 = vunpack.c.h.b16 %v363
        %v480 = vunpack.c.l.b16 %v364
        %v481 = vunpack.c.h.b16 %v364
        %v482 = vunpack.c.l.b16 %v365
        %v483 = vunpack.c.h.b16 %v365
        %v484 = vunpack.c.l.b16 %v366
        %v485 = vunpack.c.h.b16 %v366
        %v486 = vunpack.c.l.b16 %v367
        %v487 = vunpack.c.h.b16 %v367
        %v488 = vunpack.c.l.b16 %v368
        %v489 = vunpack.c.h.b16 %v368
        %v490 = vunpack.c.l.b16 %v369
        %v491 = vunpack.c.h.b16 %v369
        %v492 = vunpack.c.l.b16 %v370
        %v493 = vunpack.c.h.b16 %v370
        %v494 = vunpack.c.l.b16 %v371
        %v495 = vunpack.c.h.b16 %v371
        %v496 = vunpack.c.l.b16 %v372
        %v497 = vunpack.c.h.b16 %v372
        %v498 = vunpack.c.l.b16 %v373
        %v499 = vunpack.c.h.b16 %v373
        %v500 = vunpack.c.l.b16 %v374
        %v501 = vunpack.c.h.b16 %v374
        %v502 = vunpack.c.l.b16 %v375
        %v503 = vunpack.c.h.b16 %v375
        %v504 = vpack.c.b16 %v442, %v440
        %v505 = vpack.c.b16 %v443, %v441
        %v506 = vpack.c.b16 %v446, %v444
        %v507 = vpack.c.b16 %v447, %v445
        %v508 = vpack.c.b16 %v450, %v448
        %v509 = vpack.c.b16 %v451, %v449
        %v510 = vpack.c.b16 %v454, %v452
        %v511 = vpack.c.b16 %v455, %v453
        %v512 = vpack.c.b16 %v458, %v456
        %v513 = vpack.c.b16 %v459, %v457
        %v514 = vpack.c.b16 %v462, %v460
        %v515 = vpack.c.b16 %v463, %v461
        %v516 = vpack.c.b16 %v466, %v464
        %v517 = vpack.c.b16 %v467, %v465
        %v518 = vpack.c.b16 %v470, %v468
        %v519 = vpack.c.b16 %v471, %v469
        %v520 = vpack.c.b16 %v474, %v472
        %v521 = vpack.c.b16 %v475, %v473
        %v522 = vpack.c.b16 %v478, %v476
        %v523 = vpack.c.b16 %v479, %v477
        %v524 = vpack.c.b16 %v482, %v480
        %v525 = vpack.c.b16 %v483, %v481
        %v526 = vpack.c.b16 %v486, %v484
        %v527 = vpack.c.b16 %v487, %v485
        %v528 = vpack.c.b16 %v490, %v488
        %v529 = vpack.c.b16 %v491, %v489
        %v530 = vpack.c.b16 %v494, %v492
        %v531 = vpack.c.b16 %v495, %v493
        %v532 = vpack.c.b16 %v498, %v496
        %v533 = vpack.c.b16 %v499, %v497
        %v534 = vpack.c.b16 %v502, %v500
        %v535 = vpack.c.b16 %v503, %v501
        %v600 = vunpack.c.l.b16 %v376
        %v601 = vunpack.c.l.b16 %v377
        %v602 = vunpack.c.l.b16 %v378
        %v603 = vunpack.c.l.b16 %v379
        %v604 = vunpack.c.l.b16 %v380
        %v605 = vunpack.c.l.b16 %v381
        %v606 = vunpack.c.l.b16 %v382
        %v607 = vunpack.c.l.b16 %v383
        %v608 = vunpack.c.l.b16 %v384
        %v609 = vunpack.c.l.b16 %v385
        %v610 = vunpack.c.l.b16 %v386
        %v611 = vunpack.c.l.b16 %v387
        %v612 = vunpack.c.l.b16 %v388
        %v613 = vunpack.c.l.b16 %v389
        %v614 = vunpack.c.l.b16 %v390
        %v615 = vunpack.c.l.b16 %v391
        %v616 = vunpack.c.l.b16 %v392
        %v617 = vunpack.c.l.b16 %v393
        %v618 = vunpack.c.l.b16 %v394
        %v619 = vunpack.c.l.b16 %v395
        %v620 = vunpack.c.l.b16 %v396
        %v621 = vunpack.c.l.b16 %v397
        %v622 = vunpack.c.l.b16 %v398
        %v623 = vunpack.c.l.b16 %v399
        %v624 = vunpack.c.l.b16 %v400
        %v625 = vunpack.c.l.b16 %v401
        %v626 = vunpack.c.l.b16 %v402
        %v627 = vunpack.c.l.b16 %v403
        %v628 = vunpack.c.l.b16 %v404
        %v629 = vunpack.c.l.b16 %v405
        %v630 = vunpack.c.l.b16 %v406
        %v631 = vunpack.c.l.b16 %v407
        %v632 = vpack.c.b16 %v601, %v600
        %v633 = vpack.c.b16 %v603, %v602
        %v634 = vpack.c.b16 %v605, %v604
        %v635 = vpack.c.b16 %v607, %v606
        %v636 = vpack.c.b16 %v609, %v608
        %v637 = vpack.c.b16 %v611, %v610
        %v638 = vpack.c.b16 %v613, %v612
        %v639 = vpack.c.b16 %v615, %v614
        %v640 = vpack.c.b16 %v617, %v616
        %v641 = vpack.c.b16 %v619, %v618
        %v642 = vpack.c.b16 %v621, %v620
        %v643 = vpack.c.b16 %v623, %v622
        %v644 = vpack.c.b16 %v625, %v624
        %v645 = vpack.c.b16 %v627, %v626
        %v646 = vpack.c.b16 %v629, %v628
        %v647 = vpack.c.b16 %v631, %v630
        %664 = vmatpush.bf16.msra.mxu0 %v639
        %665 = vmatpush.bf16.msra.mxu0 %v638
        %666 = vmatpush.bf16.msra.mxu0 %v637
        %667 = vmatpush.bf16.msra.mxu0 %v636
        %668 = vmatpush.bf16.msra.mxu0 %v635
        %669 = vmatpush.bf16.msra.mxu0 %v634
        %670 = vmatpush.bf16.msra.mxu0 %v633
        %671 = vmatpush.bf16.msra.mxu0 %v632
        %672 = vmatmul.bf16.gmra.mxu0 %v504
        %v673 = vpop.f32.mrf.mxu0
        %v674 = vadd.f32 0.0, %v673
        %v675 = vpop.f32.mrf.mxu0
        %v676 = vadd.f32 0.0, %v675
        %677 = vmatmul.bf16.gmra.mxu0 %v506
        %v678 = vpop.f32.mrf.mxu0
        %v679 = vadd.f32 0.0, %v678
        %v680 = vpop.f32.mrf.mxu0
        %v681 = vadd.f32 0.0, %v680
        %682 = vmatmul.bf16.gmra.mxu0 %v508
        %v683 = vpop.f32.mrf.mxu0
        %v684 = vadd.f32 0.0, %v683
        %v685 = vpop.f32.mrf.mxu0
        %v686 = vadd.f32 0.0, %v685
        %687 = vmatmul.bf16.gmra.mxu0 %v510
        %v688 = vpop.f32.mrf.mxu0
        %v689 = vadd.f32 0.0, %v688
        %v690 = vpop.f32.mrf.mxu0
        %v691 = vadd.f32 0.0, %v690
        %692 = vmatmul.bf16.gmra.mxu0 %v512
        %v693 = vpop.f32.mrf.mxu0
        %v694 = vadd.f32 0.0, %v693
        %v695 = vpop.f32.mrf.mxu0
        %v696 = vadd.f32 0.0, %v695
        %697 = vmatmul.bf16.gmra.mxu0 %v514
        %v698 = vpop.f32.mrf.mxu0
        %v699 = vadd.f32 0.0, %v698
        %v700 = vpop.f32.mrf.mxu0
        %v701 = vadd.f32 0.0, %v700
        %702 = vmatmul.bf16.gmra.mxu0 %v516
        %v703 = vpop.f32.mrf.mxu0
        %v704 = vadd.f32 0.0, %v703
        %v705 = vpop.f32.mrf.mxu0
        %v706 = vadd.f32 0.0, %v705
        %707 = vmatmul.bf16.gmra.mxu0 %v518
        %v708 = vpop.f32.mrf.mxu0
        %v709 = vadd.f32 0.0, %v708
        %v710 = vpop.f32.mrf.mxu0
        %v711 = vadd.f32 0.0, %v710
        %712 = vmatmul.bf16.gmra.mxu0 %v520
        %v713 = vpop.f32.mrf.mxu0
        %v714 = vadd.f32 0.0, %v713
        %v715 = vpop.f32.mrf.mxu0
        %v716 = vadd.f32 0.0, %v715
        %717 = vmatmul.bf16.gmra.mxu0 %v522
        %v718 = vpop.f32.mrf.mxu0
        %v719 = vadd.f32 0.0, %v718
        %v720 = vpop.f32.mrf.mxu0
        %v721 = vadd.f32 0.0, %v720
        %722 = vmatmul.bf16.gmra.mxu0 %v524
        %v723 = vpop.f32.mrf.mxu0
        %v724 = vadd.f32 0.0, %v723
        %v725 = vpop.f32.mrf.mxu0
        %v726 = vadd.f32 0.0, %v725
        %727 = vmatmul.bf16.gmra.mxu0 %v526
        %v728 = vpop.f32.mrf.mxu0
        %v729 = vadd.f32 0.0, %v728
        %v730 = vpop.f32.mrf.mxu0
        %v731 = vadd.f32 0.0, %v730
        %732 = vmatmul.bf16.gmra.mxu0 %v528
        %v733 = vpop.f32.mrf.mxu0
        %v734 = vadd.f32 0.0, %v733
        %v735 = vpop.f32.mrf.mxu0
        %v736 = vadd.f32 0.0, %v735
        %737 = vmatmul.bf16.gmra.mxu0 %v530
        %v738 = vpop.f32.mrf.mxu0
        %v739 = vadd.f32 0.0, %v738
        %v740 = vpop.f32.mrf.mxu0
        %v741 = vadd.f32 0.0, %v740
        %742 = vmatmul.bf16.gmra.mxu0 %v532
        %v743 = vpop.f32.mrf.mxu0
        %v744 = vadd.f32 0.0, %v743
        %v745 = vpop.f32.mrf.mxu0
        %v746 = vadd.f32 0.0, %v745
        %747 = vmatmul.bf16.gmra.mxu0 %v534
        %v748 = vpop.f32.mrf.mxu0
        %v749 = vadd.f32 0.0, %v748
        %v750 = vpop.f32.mrf.mxu0
        %v751 = vadd.f32 0.0, %v750
        %752 = vdwg.mxu0
        %753 = vmatpush.bf16.msra.mxu0 %v647
        %754 = vmatpush.bf16.msra.mxu0 %v646
        %755 = vmatpush.bf16.msra.mxu0 %v645
        %756 = vmatpush.bf16.msra.mxu0 %v644
        %757 = vmatpush.bf16.msra.mxu0 %v643
        %758 = vmatpush.bf16.msra.mxu0 %v642
        %759 = vmatpush.bf16.msra.mxu0 %v641
        %760 = vmatpush.bf16.msra.mxu0 %v640
        %761 = vmatmul.bf16.gmra.mxu0 %v505
        %v762 = vpop.f32.mrf.mxu0
        %v763 = vadd.f32 %v674, %v762
        %v764 = vpop.f32.mrf.mxu0
        %v765 = vadd.f32 %v676, %v764
        %766 = vmatmul.bf16.gmra.mxu0 %v507
        %v767 = vpop.f32.mrf.mxu0
        %v768 = vadd.f32 %v679, %v767
        %v769 = vpop.f32.mrf.mxu0
        %v770 = vadd.f32 %v681, %v769
        %771 = vmatmul.bf16.gmra.mxu0 %v509
        %v772 = vpop.f32.mrf.mxu0
        %v773 = vadd.f32 %v684, %v772
        %v774 = vpop.f32.mrf.mxu0
        %v775 = vadd.f32 %v686, %v774
        %776 = vmatmul.bf16.gmra.mxu0 %v511
        %v777 = vpop.f32.mrf.mxu0
        %v778 = vadd.f32 %v689, %v777
        %v779 = vpop.f32.mrf.mxu0
        %v780 = vadd.f32 %v691, %v779
        %781 = vmatmul.bf16.gmra.mxu0 %v513
        %v782 = vpop.f32.mrf.mxu0
        %v783 = vadd.f32 %v694, %v782
        %v784 = vpop.f32.mrf.mxu0
        %v785 = vadd.f32 %v696, %v784
        %786 = vmatmul.bf16.gmra.mxu0 %v515
        %v787 = vpop.f32.mrf.mxu0
        %v788 = vadd.f32 %v699, %v787
        %v789 = vpop.f32.mrf.mxu0
        %v790 = vadd.f32 %v701, %v789
        %791 = vmatmul.bf16.gmra.mxu0 %v517
        %v792 = vpop.f32.mrf.mxu0
        %v793 = vadd.f32 %v704, %v792
        %v794 = vpop.f32.mrf.mxu0
        %v795 = vadd.f32 %v706, %v794
        %796 = vmatmul.bf16.gmra.mxu0 %v519
        %v797 = vpop.f32.mrf.mxu0
        %v798 = vadd.f32 %v709, %v797
        %v799 = vpop.f32.mrf.mxu0
        %v800 = vadd.f32 %v711, %v799
        %801 = vmatmul.bf16.gmra.mxu0 %v521
        %v802 = vpop.f32.mrf.mxu0
        %v803 = vadd.f32 %v714, %v802
        %v804 = vpop.f32.mrf.mxu0
        %v805 = vadd.f32 %v716, %v804
        %806 = vmatmul.bf16.gmra.mxu0 %v523
        %v807 = vpop.f32.mrf.mxu0
        %v808 = vadd.f32 %v719, %v807
        %v809 = vpop.f32.mrf.mxu0
        %v810 = vadd.f32 %v721, %v809
        %811 = vmatmul.bf16.gmra.mxu0 %v525
        %v812 = vpop.f32.mrf.mxu0
        %v813 = vadd.f32 %v724, %v812
        %v814 = vpop.f32.mrf.mxu0
        %v815 = vadd.f32 %v726, %v814
        %816 = vmatmul.bf16.gmra.mxu0 %v527
        %v817 = vpop.f32.mrf.mxu0
        %v818 = vadd.f32 %v729, %v817
        %v819 = vpop.f32.mrf.mxu0
        %v820 = vadd.f32 %v731, %v819
        %821 = vmatmul.bf16.gmra.mxu0 %v529
        %v822 = vpop.f32.mrf.mxu0
        %v823 = vadd.f32 %v734, %v822
        %v824 = vpop.f32.mrf.mxu0
        %v825 = vadd.f32 %v736, %v824
        %826 = vmatmul.bf16.gmra.mxu0 %v531
        %v827 = vpop.f32.mrf.mxu0
        %v828 = vadd.f32 %v739, %v827
        %v829 = vpop.f32.mrf.mxu0
        %v830 = vadd.f32 %v741, %v829
        %831 = vmatmul.bf16.gmra.mxu0 %v533
        %v832 = vpop.f32.mrf.mxu0
        %v833 = vadd.f32 %v744, %v832
        %v834 = vpop.f32.mrf.mxu0
        %v835 = vadd.f32 %v746, %v834
        %836 = vmatmul.bf16.gmra.mxu0 %v535
        %v837 = vpop.f32.mrf.mxu0
        %v838 = vadd.f32 %v749, %v837
        %v839 = vpop.f32.mrf.mxu0
        %v840 = vadd.f32 %v751, %v839
        %841 = vdwg.mxu0
        %v842 = vadd.f32 %v312, %v763
        %v843 = vadd.f32 %v313, %v765
        %v844 = vadd.f32 %v314, %v768
        %v845 = vadd.f32 %v315, %v770
        %v846 = vadd.f32 %v316, %v773
        %v847 = vadd.f32 %v317, %v775
        %v848 = vadd.f32 %v318, %v778
        %v849 = vadd.f32 %v319, %v780
        %v850 = vadd.f32 %v320, %v783
        %v851 = vadd.f32 %v321, %v785
        %v852 = vadd.f32 %v322, %v788
        %v853 = vadd.f32 %v323, %v790
        %v854 = vadd.f32 %v324, %v793
        %v855 = vadd.f32 %v325, %v795
        %v856 = vadd.f32 %v326, %v798
        %v857 = vadd.f32 %v327, %v800
        %v858 = vadd.f32 %v328, %v803
        %v859 = vadd.f32 %v329, %v805
        %v860 = vadd.f32 %v330, %v808
        %v861 = vadd.f32 %v331, %v810
        %v862 = vadd.f32 %v332, %v813
        %v863 = vadd.f32 %v333, %v815
        %v864 = vadd.f32 %v334, %v818
        %v865 = vadd.f32 %v335, %v820
        %v866 = vadd.f32 %v336, %v823
        %v867 = vadd.f32 %v337, %v825
        %v868 = vadd.f32 %v338, %v828
        %v869 = vadd.f32 %v339, %v830
        %v870 = vadd.f32 %v340, %v833
        %v871 = vadd.f32 %v341, %v835
        %v872 = vadd.f32 %v342, %v838
        %v873 = vadd.f32 %v343, %v840
        %vm874 = vcmask 523264
        %875 = vst.msk [vmem:[#allocation2] sm:$0xff] %vm874, %v842
        %876 = vst.msk [vmem:[#allocation2 + $0x8] sm:$0xff] %vm874, %v843
        %877 = vst.msk [vmem:[#allocation2 + $0x10] sm:$0xff] %vm874, %v844
        %878 = vst.msk [vmem:[#allocation2 + $0x18] sm:$0xff] %vm874, %v845
        %879 = vst.msk [vmem:[#allocation2 + $0x20] sm:$0xff] %vm874, %v846
        %880 = vst.msk [vmem:[#allocation2 + $0x28] sm:$0xff] %vm874, %v847
        %881 = vst.msk [vmem:[#allocation2 + $0x30] sm:$0xff] %vm874, %v848
        %882 = vst.msk [vmem:[#allocation2 + $0x38] sm:$0xff] %vm874, %v849
        %883 = vst.msk [vmem:[#allocation2 + $0x40] sm:$0xff] %vm874, %v850
        %884 = vst.msk [vmem:[#allocation2 + $0x48] sm:$0xff] %vm874, %v851
        %885 = vst.msk [vmem:[#allocation2 + $0x50] sm:$0xff] %vm874, %v852
        %886 = vst.msk [vmem:[#allocation2 + $0x58] sm:$0xff] %vm874, %v853
        %887 = vst.msk [vmem:[#allocation2 + $0x60] sm:$0xff] %vm874, %v854
        %888 = vst.msk [vmem:[#allocation2 + $0x68] sm:$0xff] %vm874, %v855
        %889 = vst.msk [vmem:[#allocation2 + $0x70] sm:$0xff] %vm874, %v856
        %890 = vst.msk [vmem:[#allocation2 + $0x78] sm:$0xff] %vm874, %v857
        %891 = vst.msk [vmem:[#allocation2 + $0x80] sm:$0xff] %vm874, %v858
        %892 = vst.msk [vmem:[#allocation2 + $0x88] sm:$0xff] %vm874, %v859
        %893 = vst.msk [vmem:[#allocation2 + $0x90] sm:$0xff] %vm874, %v860
        %894 = vst.msk [vmem:[#allocation2 + $0x98] sm:$0xff] %vm874, %v861
        %895 = vst.msk [vmem:[#allocation2 + $0xa0] sm:$0xff] %vm874, %v862
        %896 = vst.msk [vmem:[#allocation2 + $0xa8] sm:$0xff] %vm874, %v863
        %897 = vst.msk [vmem:[#allocation2 + $0xb0] sm:$0xff] %vm874, %v864
        %898 = vst.msk [vmem:[#allocation2 + $0xb8] sm:$0xff] %vm874, %v865
        %899 = vst.msk [vmem:[#allocation2 + $0xc0] sm:$0xff] %vm874, %v866
        %900 = vst.msk [vmem:[#allocation2 + $0xc8] sm:$0xff] %vm874, %v867
        %901 = vst.msk [vmem:[#allocation2 + $0xd0] sm:$0xff] %vm874, %v868
        %902 = vst.msk [vmem:[#allocation2 + $0xd8] sm:$0xff] %vm874, %v869
        %903 = vst.msk [vmem:[#allocation2 + $0xe0] sm:$0xff] %vm874, %v870
        %904 = vst.msk [vmem:[#allocation2 + $0xe8] sm:$0xff] %vm874, %v871
        %905 = vst.msk [vmem:[#allocation2 + $0xf0] sm:$0xff] %vm874, %v872
        %906 = vst.msk [vmem:[#allocation2 + $0xf8] sm:$0xff] %vm874, %v873
        // Predicated region
        $region41: #{tpu_custom_call.1} parent=31 // pred_check
          %p907 = pneg %p275
        $region42: #{tpu_custom_call.1} parent=31 // pred_check_branch
          %909 = sbr.rel (%p907) target = $region44
        $region43: #{tpu_custom_call.1} parent=31 // pred_region
          %v910 = vld [vmem:[#allocation2] sm:$0xff]
          %v911 = vld [vmem:[#allocation2 + $0x8] sm:$0xff]
          %v912 = vld [vmem:[#allocation2 + $0x10] sm:$0xff]
          %v913 = vld [vmem:[#allocation2 + $0x18] sm:$0xff]
          %v914 = vld [vmem:[#allocation2 + $0x20] sm:$0xff]
          %v915 = vld [vmem:[#allocation2 + $0x28] sm:$0xff]
          %v916 = vld [vmem:[#allocation2 + $0x30] sm:$0xff]
          %v917 = vld [vmem:[#allocation2 + $0x38] sm:$0xff]
          %v918 = vld [vmem:[#allocation2 + $0x40] sm:$0xff]
          %v919 = vld [vmem:[#allocation2 + $0x48] sm:$0xff]
          %v920 = vld [vmem:[#allocation2 + $0x50] sm:$0xff]
          %v921 = vld [vmem:[#allocation2 + $0x58] sm:$0xff]
          %v922 = vld [vmem:[#allocation2 + $0x60] sm:$0xff]
          %v923 = vld [vmem:[#allocation2 + $0x68] sm:$0xff]
          %v924 = vld [vmem:[#allocation2 + $0x70] sm:$0xff]
          %v925 = vld [vmem:[#allocation2 + $0x78] sm:$0xff]
          %v926 = vld [vmem:[#allocation2 + $0x80] sm:$0xff]
          %v927 = vld [vmem:[#allocation2 + $0x88] sm:$0xff]
          %v928 = vld [vmem:[#allocation2 + $0x90] sm:$0xff]
          %v929 = vld [vmem:[#allocation2 + $0x98] sm:$0xff]
          %v930 = vld [vmem:[#allocation2 + $0xa0] sm:$0xff]
          %v931 = vld [vmem:[#allocation2 + $0xa8] sm:$0xff]
          %v932 = vld [vmem:[#allocation2 + $0xb0] sm:$0xff]
          %v933 = vld [vmem:[#allocation2 + $0xb8] sm:$0xff]
          %v934 = vld [vmem:[#allocation2 + $0xc0] sm:$0xff]
          %v935 = vld [vmem:[#allocation2 + $0xc8] sm:$0xff]
          %v936 = vld [vmem:[#allocation2 + $0xd0] sm:$0xff]
          %v937 = vld [vmem:[#allocation2 + $0xd8] sm:$0xff]
          %v938 = vld [vmem:[#allocation2 + $0xe0] sm:$0xff]
          %v939 = vld [vmem:[#allocation2 + $0xe8] sm:$0xff]
          %v940 = vld [vmem:[#allocation2 + $0xf0] sm:$0xff]
          %v941 = vld [vmem:[#allocation2 + $0xf8] sm:$0xff]
          %v942 = vld [vmem:[%s265] sm:$0x1]
          %v944 = vperm.slane %v942, 0
          %v946 = vadd.f32 %v910, %v944
          %v947 = vadd.f32 %v911, %v944
          %v948 = vadd.f32 %v912, %v944
          %v949 = vadd.f32 %v913, %v944
          %v950 = vadd.f32 %v914, %v944
          %v951 = vadd.f32 %v915, %v944
          %v952 = vadd.f32 %v916, %v944
          %v953 = vadd.f32 %v917, %v944
          %v954 = vadd.f32 %v918, %v944
          %v955 = vadd.f32 %v919, %v944
          %v956 = vadd.f32 %v920, %v944
          %v957 = vadd.f32 %v921, %v944
          %v958 = vadd.f32 %v922, %v944
          %v959 = vadd.f32 %v923, %v944
          %v960 = vadd.f32 %v924, %v944
          %v961 = vadd.f32 %v925, %v944
          %v962 = vadd.f32 %v926, %v944
          %v963 = vadd.f32 %v927, %v944
          %v964 = vadd.f32 %v928, %v944
          %v965 = vadd.f32 %v929, %v944
          %v966 = vadd.f32 %v930, %v944
          %v967 = vadd.f32 %v931, %v944
          %v968 = vadd.f32 %v932, %v944
          %v969 = vadd.f32 %v933, %v944
          %v970 = vadd.f32 %v934, %v944
          %v971 = vadd.f32 %v935, %v944
          %v972 = vadd.f32 %v936, %v944
          %v973 = vadd.f32 %v937, %v944
          %v974 = vadd.f32 %v938, %v944
          %v975 = vadd.f32 %v939, %v944
          %v976 = vadd.f32 %v940, %v944
          %v977 = vadd.f32 %v941, %v944
          %v978 = vmax.f32 %v946, 0.0
          %v979 = vmax.f32 %v947, 0.0
          %v980 = vmax.f32 %v948, 0.0
          %v981 = vmax.f32 %v949, 0.0
          %v982 = vmax.f32 %v950, 0.0
          %v983 = vmax.f32 %v951, 0.0
          %v984 = vmax.f32 %v952, 0.0
          %v985 = vmax.f32 %v953, 0.0
          %v986 = vmax.f32 %v954, 0.0
          %v987 = vmax.f32 %v955, 0.0
          %v988 = vmax.f32 %v956, 0.0
          %v989 = vmax.f32 %v957, 0.0
          %v990 = vmax.f32 %v958, 0.0
          %v991 = vmax.f32 %v959, 0.0
          %v992 = vmax.f32 %v960, 0.0
          %v993 = vmax.f32 %v961, 0.0
          %v994 = vmax.f32 %v962, 0.0
          %v995 = vmax.f32 %v963, 0.0
          %v996 = vmax.f32 %v964, 0.0
          %v997 = vmax.f32 %v965, 0.0
          %v998 = vmax.f32 %v966, 0.0
          %v999 = vmax.f32 %v967, 0.0
          %v1000 = vmax.f32 %v968, 0.0
          %v1001 = vmax.f32 %v969, 0.0
          %v1002 = vmax.f32 %v970, 0.0
          %v1003 = vmax.f32 %v971, 0.0
          %v1004 = vmax.f32 %v972, 0.0
          %v1005 = vmax.f32 %v973, 0.0
          %v1006 = vmax.f32 %v974, 0.0
          %v1007 = vmax.f32 %v975, 0.0
          %v1008 = vmax.f32 %v976, 0.0
          %v1009 = vmax.f32 %v977, 0.0
          %v1010 = vpack.c.bf16 %v978, %v978
          %v1011 = vpack.c.bf16 %v979, %v979
          %v1012 = vpack.c.bf16 %v980, %v980
          %v1013 = vpack.c.bf16 %v981, %v981
          %v1014 = vpack.c.bf16 %v982, %v982
          %v1015 = vpack.c.bf16 %v983, %v983
          %v1016 = vpack.c.bf16 %v984, %v984
          %v1017 = vpack.c.bf16 %v985, %v985
          %v1018 = vpack.c.bf16 %v986, %v986
          %v1019 = vpack.c.bf16 %v987, %v987
          %v1020 = vpack.c.bf16 %v988, %v988
          %v1021 = vpack.c.bf16 %v989, %v989
          %v1022 = vpack.c.bf16 %v990, %v990
          %v1023 = vpack.c.bf16 %v991, %v991
          %v1024 = vpack.c.bf16 %v992, %v992
          %v1025 = vpack.c.bf16 %v993, %v993
          %v1026 = vpack.c.bf16 %v994, %v994
          %v1027 = vpack.c.bf16 %v995, %v995
          %v1028 = vpack.c.bf16 %v996, %v996
          %v1029 = vpack.c.bf16 %v997, %v997
          %v1030 = vpack.c.bf16 %v998, %v998
          %v1031 = vpack.c.bf16 %v999, %v999
          %v1032 = vpack.c.bf16 %v1000, %v1000
          %v1033 = vpack.c.bf16 %v1001, %v1001
          %v1034 = vpack.c.bf16 %v1002, %v1002
          %v1035 = vpack.c.bf16 %v1003, %v1003
          %v1036 = vpack.c.bf16 %v1004, %v1004
          %v1037 = vpack.c.bf16 %v1005, %v1005
          %v1038 = vpack.c.bf16 %v1006, %v1006
          %v1039 = vpack.c.bf16 %v1007, %v1007
          %v1040 = vpack.c.bf16 %v1008, %v1008
          %v1041 = vpack.c.bf16 %v1009, %v1009
          %vm1042 = vcmask 519168
          %1043 = vst.msk [vmem:[%s273] sm:$0xf] %vm1042, %v1010
          %1044 = vst.msk [vmem:[%s273 + $0x4] sm:$0xf] %vm1042, %v1011
          %1045 = vst.msk [vmem:[%s273 + $0x8] sm:$0xf] %vm1042, %v1012
          %1046 = vst.msk [vmem:[%s273 + $0xc] sm:$0xf] %vm1042, %v1013
          %1047 = vst.msk [vmem:[%s273 + $0x10] sm:$0xf] %vm1042, %v1014
          %1048 = vst.msk [vmem:[%s273 + $0x14] sm:$0xf] %vm1042, %v1015
          %1049 = vst.msk [vmem:[%s273 + $0x18] sm:$0xf] %vm1042, %v1016
          %1050 = vst.msk [vmem:[%s273 + $0x1c] sm:$0xf] %vm1042, %v1017
          %1051 = vst.msk [vmem:[%s273 + $0x20] sm:$0xf] %vm1042, %v1018
          %1052 = vst.msk [vmem:[%s273 + $0x24] sm:$0xf] %vm1042, %v1019
          %1053 = vst.msk [vmem:[%s273 + $0x28] sm:$0xf] %vm1042, %v1020
          %1054 = vst.msk [vmem:[%s273 + $0x2c] sm:$0xf] %vm1042, %v1021
          %1055 = vst.msk [vmem:[%s273 + $0x30] sm:$0xf] %vm1042, %v1022
          %1056 = vst.msk [vmem:[%s273 + $0x34] sm:$0xf] %vm1042, %v1023
          %1057 = vst.msk [vmem:[%s273 + $0x38] sm:$0xf] %vm1042, %v1024
          %1058 = vst.msk [vmem:[%s273 + $0x3c] sm:$0xf] %vm1042, %v1025
          %1059 = vst.msk [vmem:[%s273 + $0x40] sm:$0xf] %vm1042, %v1026
          %1060 = vst.msk [vmem:[%s273 + $0x44] sm:$0xf] %vm1042, %v1027
          %1061 = vst.msk [vmem:[%s273 + $0x48] sm:$0xf] %vm1042, %v1028
          %1062 = vst.msk [vmem:[%s273 + $0x4c] sm:$0xf] %vm1042, %v1029
          %1063 = vst.msk [vmem:[%s273 + $0x50] sm:$0xf] %vm1042, %v1030
          %1064 = vst.msk [vmem:[%s273 + $0x54] sm:$0xf] %vm1042, %v1031
          %1065 = vst.msk [vmem:[%s273 + $0x58] sm:$0xf] %vm1042, %v1032
          %1066 = vst.msk [vmem:[%s273 + $0x5c] sm:$0xf] %vm1042, %v1033
          %1067 = vst.msk [vmem:[%s273 + $0x60] sm:$0xf] %vm1042, %v1034
          %1068 = vst.msk [vmem:[%s273 + $0x64] sm:$0xf] %vm1042, %v1035
          %1069 = vst.msk [vmem:[%s273 + $0x68] sm:$0xf] %vm1042, %v1036
          %1070 = vst.msk [vmem:[%s273 + $0x6c] sm:$0xf] %vm1042, %v1037
          %1071 = vst.msk [vmem:[%s273 + $0x70] sm:$0xf] %vm1042, %v1038
          %1072 = vst.msk [vmem:[%s273 + $0x74] sm:$0xf] %vm1042, %v1039
          %1073 = vst.msk [vmem:[%s273 + $0x78] sm:$0xf] %vm1042, %v1040
          %1074 = vst.msk [vmem:[%s273 + $0x7c] sm:$0xf] %vm1042, %v1041
        $region44: #{tpu_custom_call.1} parent=31 // pred_fallthru
          _
        %s1075 = smul.u32 32, %s22
        %p1076 = scmp.lt.s32.totalorder %s1075, 63
        %s1077 = scalar_select %p1076, %s1075, 63
        %p1078 = scmp.lt.s32.totalorder %s23, 0
        %s1079 = scalar_select %p1078, %s23, 0
        %s1080 = sadd.s32 %s1079, %s1077
        %s1081 = smul.addr %s1080, 4
        %s1082 = scalar_lea.vmem %s3, %s1081
        // Predicated region
        $region45: #{tpu_custom_call.1} parent=31 // pred_check
          %p1083 = pneg %p138
        $region46: #{tpu_custom_call.1} parent=31 // pred_check_branch
          %1085 = sbr.rel (%p1083) target = $region48
        $region47: #{tpu_custom_call.1} parent=31 // pred_region
          %s1086 = smul.u32 32, %s22
        $region48: #{tpu_custom_call.1} parent=31 // pred_fallthru
          _
      $region32: #{tpu_custom_call.1} parent=5 // pred_fallthru
        _
      %p1087 = scmp.le.s32.totalorder 2, %s12
      // Predicated region
      $region49: #{tpu_custom_call.1} parent=5 // pred_check
        %p1088 = pneg %p1087
      $region50: #{tpu_custom_call.1} parent=5 // pred_check_branch
        %1090 = sbr.rel (%p1088) target = $region52
      $region51: #{tpu_custom_call.1} parent=5 // pred_region
        %s1091 = ssub.s32 %s12, 2
        // Predicated region
        $region53: #{tpu_custom_call.1} parent=51 // pred_check
          %p1092 = pneg %p144
        $region54: #{tpu_custom_call.1} parent=51 // pred_check_branch
          %1094 = sbr.rel (%p1092) target = $region56
        $region55: #{tpu_custom_call.1} parent=51 // pred_region
          %s1095 = smul.u32 32, %s25
          %p1096 = scmp.lt.s32.totalorder %s1095, 63
          %s1097 = scalar_select %p1096, %s1095, 63
          %p1098 = scmp.lt.s32.totalorder %s26, 0
          %s1099 = scalar_select %p1098, %s26, 0
          %s1100 = sadd.s32 %s1099, %s1097
          %s1101 = smul.addr %s1100, 4
          %s1102 = scalar_lea.vmem %s3, %s1101
        $region56: #{tpu_custom_call.1} parent=51 // pred_fallthru
          _
      $region52: #{tpu_custom_call.1} parent=5 // pred_fallthru
        _
    $region6: #{tpu_custom_call.1} parent=1 // loop_footer
      %s16 = sadd.s32 1, %s12
    $region7: #{tpu_custom_call.1} parent=1 // loop_footer_branch
      %11 = sbr.rel target = $region3
    $region8: #{tpu_custom_call.1} parent=1 // loop_exit
      _
    %1103 = vsyncpa [#allocation4], 1
    %s1104 = scalar_lea.sflag [#allocation4], 1
    %1105 = vsyncpa %s1104, 1

</llo_original>
